<compile_context>
chip_gen: v5e
topology: v5e:2x2
jax: 0.10.0
libtpu: 0.0.40
codegen_flags: <defaults>
</compile_context>

<pallas_src>
import math

import numpy as np
import jax
import jax.numpy as jnp
from jax.experimental import pallas as pl
from jax.experimental.pallas import tpu as pltpu


# ---------------------------------------------------------------------------
# Kernel
# ---------------------------------------------------------------------------
def _token_conv_kernel(w_ref, x_ref, o_ref):
    """Folded-K (K = 9*c_in) conv-as-GEMM.

    w_ref: (tn, K)      bf16   folded weight tile (d_model tile x 3*3*c_in)
    x_ref: (Bt, K, tm)  bf16   pre-shifted input slabs, spatial axis in lanes
    o_ref: (Bt, tn, tm) f32    NCHW-flattened output tile (channels x spatial)
    """
    w = w_ref[...]
    for bi in range(x_ref.shape[0]):           # Bt is small and static -> unrolled
        o_ref[bi] = jnp.dot(
            w, x_ref[bi], preferred_element_type=jnp.float32).astype(o_ref.dtype)


# ---------------------------------------------------------------------------
# Tile / VMEM sizing helpers
# ---------------------------------------------------------------------------
def _largest_aligned_divisor(total, align, cap):
    """Largest divisor of `total` that is a multiple of `align` and <= cap.

    Falls back to `total` itself (a block equal to the full dim is always legal).
    """
    if total <= cap:
        return total
    d = (cap // align) * align
    while d >= align:
        if total % d == 0:
            return d
        d -= align
    return total


def _largest_divisor_leq(total, cap):
    d = max(1, min(total, cap))
    while total % d != 0:
        d -= 1
    return d


def _vmem_block_bytes(block_shape, dtype):
    """Padding-aware VMEM footprint of one block (sublane/lane rounding)."""
    itemsize = jnp.dtype(dtype).itemsize
    packing = max(1, 4 // itemsize)            # sub-32-bit dtypes pack along sublanes
    dims = [int(d) for d in block_shape]
    if len(dims) == 1:
        dims = [1] + dims
    lane = -(-dims[-1] // 128) * 128
    sub = -(-dims[-2] // (8 * packing)) * (8 * packing)
    lead = 1
    for d in dims[:-2]:
        lead *= d
    return lead * sub * lane * itemsize


def _vmem_capacity_bytes():
    try:
        cap = getattr(pltpu.get_tpu_info(), "vmem_capacity_bytes", None)
        if cap:
            return int(cap)
    except Exception:
        pass
    return 64 << 20                            # conservative (v7x physical VMEM)


# ---------------------------------------------------------------------------
# Forward wrapper
# ---------------------------------------------------------------------------
def tmae_token_embedding_forward(x, conv_w, *, compute_dtype=jnp.bfloat16,
                                 out_dtype=jnp.float32,
                                 max_tile_n=256, max_tile_m=2048, max_tile_b=8):
    """Forward pass of TMAE_TokenEmbedding.

    x:      (B, C, H, W) float32 NCHW (as in the PyTorch module).
    conv_w: (d_model, C, 3, 3) float32 OIHW Conv2d weight (bias=False).
    Returns (B, d_model, H, W) in `out_dtype` (float32 by default; pass bfloat16 to halve
    output HBM traffic if the consumer tolerates it).
    """
    B, C, H, W = x.shape
    d_model = conv_w.shape[0]
    HW = H * W
    K = 9 * C

    # --- input-side prep (the *small* tensor): circular pad + folded-K shifted slabs ---
    # x_col[b, (3*kh+kw)*C + c, h*W + w] = x_pad[b, c, h+kh, w+kw]
    x_pad = jnp.pad(x.astype(compute_dtype),
                    ((0, 0), (0, 0), (1, 1), (1, 1)), mode="wrap")
    slabs = [x_pad[:, :, kh:kh + H, kw:kw + W] for kh in range(3) for kw in range(3)]
    x_col = jnp.concatenate(slabs, axis=1).reshape(B, K, HW)

    # (d_model, C, 3, 3) -> (d_model, kh, kw, c) -> (d_model, 9*C): same (kh, kw, c) K-order.
    w_mat = jnp.transpose(conv_w, (0, 2, 3, 1)).reshape(d_model, K).astype(compute_dtype)

    # --- tile selection: lane-dense output, vreg-friendly tn, batched small planes ---
    tn = _largest_aligned_divisor(d_model, 128, max_tile_n)
    if tn == d_model and d_model > max_tile_n:
        tn = _largest_aligned_divisor(d_model, 8, max_tile_n)
    tm = _largest_aligned_divisor(HW, 128, max_tile_m)
    Bt = _largest_divisor_leq(B, max_tile_b)

    def working_set(bt, tn_, tm_):
        w_blk = _vmem_block_bytes((tn_, K), compute_dtype)   # lane-padded, tiny
        x_blk = _vmem_block_bytes((bt, K, tm_), compute_dtype)
        o_blk = _vmem_block_bytes((bt, tn_, tm_), out_dtype)
        return 2 * (w_blk + x_blk + o_blk)                   # double-buffered in + out

    cap = _vmem_capacity_bytes()
    budget = min(int(cap * 0.6), 40 << 20)                   # headroom on v7x's 64 MiB
    while working_set(Bt, tn, tm) > budget:
        if tm % 256 == 0 and tm > 128:
            tm //= 2                                         # stays a mult-of-128 divisor
        elif tn % 16 == 0 and tn > 128:
            tn //= 2
        elif Bt > 1:
            Bt = _largest_divisor_leq(B, Bt - 1)
        else:
            break
    vmem_limit = int(min(max(working_set(Bt, tn, tm) + (8 << 20), 32 << 20),
                         int(cap * 0.85)))

    # --- one folded-K GEMM per (batch-tile, spatial-tile, d_model-tile) output block ---
    grid = (B // Bt, HW // tm, d_model // tn)   # d_model innermost: x_col block reused
    out_flat = pl.pallas_call(
        _token_conv_kernel,
        out_shape=jax.ShapeDtypeStruct((B, d_model, HW), out_dtype),
        grid=grid,
        in_specs=[
            pl.BlockSpec((tn, K), lambda b, m, j: (j, 0)),
            pl.BlockSpec((Bt, K, tm), lambda b, m, j: (b, 0, m)),
        ],
        out_specs=pl.BlockSpec((Bt, tn, tm), lambda b, m, j: (b, j, m)),
        compiler_params=pltpu.CompilerParams(
            dimension_semantics=("parallel", "parallel", "parallel"),
            vmem_limit_bytes=vmem_limit,
        ),
    )(w_mat, x_col)

    # (B, d_model, H*W) -> (B, d_model, H, W): trailing-dim split, no transpose pass.
    return out_flat.reshape(B, d_model, H, W)


# ---------------------------------------------------------------------------
# Reference + demo
# ---------------------------------------------------------------------------
def _reference_forward(x, conv_w, compute_dtype=jnp.bfloat16):
    """Pure-JAX reference: circular-padded 3x3 conv with the same bf16-rounded operands."""
    xq = x.astype(compute_dtype).astype(jnp.float32)
    wq = conv_w.astype(compute_dtype).astype(jnp.float32)
    x_pad = jnp.pad(xq, ((0, 0), (0, 0), (1, 1), (1, 1)), mode="wrap")
    return jax.lax.conv_general_dilated(
        x_pad, wq, window_strides=(1, 1), padding="VALID",
        dimension_numbers=("NCHW", "OIHW", "NCHW"),
        preferred_element_type=jnp.float32)


if __name__ == "__main__":
    # Small shapes consistent with the module: x is (B, c_in, H, W) NCHW.
    B, C, H, W = 2, 4, 16, 16
    d_model = 128

    key = jax.random.PRNGKey(0)
    k_w, k_x = jax.random.split(key)

    # Conv2d weight: kaiming_normal_(mode='fan_in', nonlinearity='leaky_relu'), no bias.
    fan_in = C * 3 * 3
    gain = math.sqrt(2.0 / (1.0 + 0.01 ** 2))
    conv_w = jax.random.normal(k_w, (d_model, C, 3, 3), jnp.float32) * (gain / math.sqrt(fan_in))
    x = jax.random.normal(k_x, (B, C, H, W), jnp.float32)

    fwd = jax.jit(tmae_token_embedding_forward)
    out = jax.block_until_ready(fwd(x, conv_w))
    ref = jax.block_until_ready(_reference_forward(x, conv_w))

    np.testing.assert_allclose(np.asarray(out), np.asarray(ref), rtol=1e-3, atol=1e-3)
    assert out.shape == (B, d_model, H, W)

    print("KERNEL_OK")
</pallas_src>

<mosaic_0001>
module attributes {stable_mosaic.version = 11 : i64} {
  func.func @_token_conv_kernel(%arg0: i32, %arg1: i32, %arg2: i32, %arg3: memref<128x36xbf16, #tpu.memory_space<vmem>>, %arg4: memref<2x36x256xbf16, #tpu.memory_space<vmem>>, %arg5: memref<2x128x256xf32, #tpu.memory_space<vmem>>) attributes {dimension_semantics = [#tpu.dimension_semantics<parallel>, #tpu.dimension_semantics<parallel>, #tpu.dimension_semantics<parallel>], iteration_bounds = array<i64: 1, 1, 1>, scalar_prefetch = 0 : i64, scratch_operands = 0 : i64, tpu.core_type = #tpu.core_type<tc>, window_params = [{transform_indices = @transform_0, window_bounds = array<i64: 128, 36>}, {transform_indices = @transform_1, window_bounds = array<i64: 2, 36, 256>}, {transform_indices = @transform_2, window_bounds = array<i64: 2, 128, 256>}]} {
    %c0 = arith.constant 0 : index
    %c0_0 = arith.constant 0 : index
    %0 = vector.load %arg3[%c0, %c0_0] : memref<128x36xbf16, #tpu.memory_space<vmem>>, vector<128x36xbf16>
    %c0_1 = arith.constant 0 : index
    %c0_2 = arith.constant 0 : index
    %c0_3 = arith.constant 0 : index
    %1 = vector.load %arg4[%c0_1, %c0_2, %c0_3] : memref<2x36x256xbf16, #tpu.memory_space<vmem>>, vector<1x36x256xbf16>
    %2 = vector.shape_cast %1 : vector<1x36x256xbf16> to vector<36x256xbf16>
    %cst = arith.constant dense<0.000000e+00> : vector<128x256xf32>
    %3 = tpu.matmul %0, %2, %cst {dimension_numbers = #tpu.dot_dimension_numbers<[1], [0], [0], [1], [0, 0, 1, 1], [], []>} : vector<128x36xbf16>, vector<36x256xbf16>, vector<128x256xf32> -> vector<128x256xf32>
    %c0_4 = arith.constant 0 : index
    %c0_5 = arith.constant 0 : index
    %c0_6 = arith.constant 0 : index
    %4 = vector.load %arg5[%c0_4, %c0_5, %c0_6] : memref<2x128x256xf32, #tpu.memory_space<vmem>>, vector<1x128x256xf32>
    %5 = vector.shape_cast %4 : vector<1x128x256xf32> to vector<128x256xf32>
    %6 = vector.shape_cast %3 : vector<128x256xf32> to vector<1x128x256xf32>
    tpu.vector_store %arg5[%c0_4, %c0_5, %c0_6], %6 {strides = array<i32>} : memref<2x128x256xf32, #tpu.memory_space<vmem>>, vector<1x128x256xf32>,
    %c1 = arith.constant 1 : index
    %c0_7 = arith.constant 0 : index
    %c0_8 = arith.constant 0 : index
    %7 = vector.load %arg4[%c1, %c0_7, %c0_8] : memref<2x36x256xbf16, #tpu.memory_space<vmem>>, vector<1x36x256xbf16>
    %8 = vector.shape_cast %7 : vector<1x36x256xbf16> to vector<36x256xbf16>
    %cst_9 = arith.constant dense<0.000000e+00> : vector<128x256xf32>
    %9 = tpu.matmul %0, %8, %cst_9 {dimension_numbers = #tpu.dot_dimension_numbers<[1], [0], [0], [1], [0, 0, 1, 1], [], []>} : vector<128x36xbf16>, vector<36x256xbf16>, vector<128x256xf32> -> vector<128x256xf32>
    %c1_10 = arith.constant 1 : index
    %c0_11 = arith.constant 0 : index
    %c0_12 = arith.constant 0 : index
    %10 = vector.load %arg5[%c1_10, %c0_11, %c0_12] : memref<2x128x256xf32, #tpu.memory_space<vmem>>, vector<1x128x256xf32>
    %11 = vector.shape_cast %10 : vector<1x128x256xf32> to vector<128x256xf32>
    %12 = vector.shape_cast %9 : vector<128x256xf32> to vector<1x128x256xf32>
    tpu.vector_store %arg5[%c1_10, %c0_11, %c0_12], %12 {strides = array<i32>} : memref<2x128x256xf32, #tpu.memory_space<vmem>>, vector<1x128x256xf32>,
    return
  }
  func.func @transform_0(%arg0: i32, %arg1: i32, %arg2: i32) -> (i32, i32) {
    %c0_i32 = arith.constant 0 : i32
    %c0_i32_0 = arith.constant 0 : i32
    return %arg2, %c0_i32 : i32, i32
  }
  func.func @transform_1(%arg0: i32, %arg1: i32, %arg2: i32) -> (i32, i32, i32) {
    %c0_i32 = arith.constant 0 : i32
    %c0_i32_0 = arith.constant 0 : i32
    return %arg0, %c0_i32, %arg1 : i32, i32, i32
  }
  func.func @transform_2(%arg0: i32, %arg1: i32, %arg2: i32) -> (i32, i32, i32) {
    %c0_i32 = arith.constant 0 : i32
    return %arg0, %arg2, %arg1 : i32, i32, i32
  }
}

</mosaic_0001>

<llo_original>
// kernel: tmae_token_embedding_forward.1
$region0: #{tmae_token_embedding_forward.1}
  #allocation0 [shape = 'u32[]', space=smem, size = 0x4, offset = 0x4, fixed_abs, tag = 'smem constant byte address 0x4 - core index']
  #allocation1 [shape = 'u32[72,128]{1,0:T(1,128)}', space=vmem, size = 0x9000, scoped, tag = 'internal scratch']
  %s0 = inlined_call_operand.vmem [shape: bf16[128,36], index: 0, kind: input, shape index: {}]
  %s1 = inlined_call_operand.vmem [shape: bf16[2,36,256], index: 1, kind: input, shape index: {}]
  %s2 = inlined_call_operand.vmem [shape: f32[2,128,256], index: 2, kind: output, shape index: {}]
  %s3 = sld [smem:[#allocation0]]
  $region18: #{tmae_token_embedding_forward.1} parent=0
    _
  %s5 = ssub.s32 1, %s3
  %s6 = scalar_select 0, %s5, %s3
  // Predicated region
  $region2: #{tmae_token_embedding_forward.1} parent=0 // pred_check
    _
  $region3: #{tmae_token_embedding_forward.1} parent=0 // pred_check_branch
    %8 = sbr.rel (0) target = $region5
  $region4: #{tmae_token_embedding_forward.1} parent=0 // pred_region
    _
  $region5: #{tmae_token_embedding_forward.1} parent=0 // pred_fallthru
    _
  // Predicated region
  $region6: #{tmae_token_embedding_forward.1} parent=0 // pred_check
    _
  $region7: #{tmae_token_embedding_forward.1} parent=0 // pred_check_branch
    %10 = sbr.rel (0) target = $region9
  $region8: #{tmae_token_embedding_forward.1} parent=0 // pred_region
    _
  $region9: #{tmae_token_embedding_forward.1} parent=0 // pred_fallthru
    _
  %v12 = vld [vmem:[%s0] sm:$0xf]
  %v13 = vld [vmem:[%s0 + $0x4] sm:$0xf]
  %v14 = vld [vmem:[%s0 + $0x8] sm:$0xf]
  %v15 = vld [vmem:[%s0 + $0xc] sm:$0xf]
  %v16 = vld [vmem:[%s0 + $0x10] sm:$0xf]
  %v17 = vld [vmem:[%s0 + $0x14] sm:$0xf]
  %v18 = vld [vmem:[%s0 + $0x18] sm:$0xf]
  %v19 = vld [vmem:[%s0 + $0x1c] sm:$0xf]
  %v20 = vld [vmem:[%s0 + $0x20] sm:$0xf]
  %v21 = vld [vmem:[%s0 + $0x24] sm:$0xf]
  %v22 = vld [vmem:[%s0 + $0x28] sm:$0xf]
  %v23 = vld [vmem:[%s0 + $0x2c] sm:$0xf]
  %v24 = vld [vmem:[%s0 + $0x30] sm:$0xf]
  %v25 = vld [vmem:[%s0 + $0x34] sm:$0xf]
  %v26 = vld [vmem:[%s0 + $0x38] sm:$0xf]
  %v27 = vld [vmem:[%s0 + $0x3c] sm:$0xf]
  %v28 = vld [vmem:[%s1] sm:$0xff]
  %v29 = vld [vmem:[%s1 + $0x8] sm:$0xff]
  %v30 = vld [vmem:[%s1 + $0x10] sm:$0xff]
  %v31 = vld [vmem:[%s1 + $0x18] sm:$0xff]
  %v32 = vld [vmem:[%s1 + $0x20] sm:$0x33]
  %v49 = vunpack.c.l.b16 %v12
  %v50 = vunpack.c.l.b16 %v13
  %v51 = vunpack.c.l.b16 %v14
  %v52 = vunpack.c.l.b16 %v15
  %v53 = vunpack.c.l.b16 %v16
  %v54 = vunpack.c.l.b16 %v17
  %v55 = vunpack.c.l.b16 %v18
  %v56 = vunpack.c.l.b16 %v19
  %v57 = vunpack.c.l.b16 %v20
  %v58 = vunpack.c.l.b16 %v21
  %v59 = vunpack.c.l.b16 %v22
  %v60 = vunpack.c.l.b16 %v23
  %v61 = vunpack.c.l.b16 %v24
  %v62 = vunpack.c.l.b16 %v25
  %v63 = vunpack.c.l.b16 %v26
  %v64 = vunpack.c.l.b16 %v27
  %v65 = vpack.c.b16 %v50, %v49
  %v66 = vpack.c.b16 %v52, %v51
  %v67 = vpack.c.b16 %v54, %v53
  %v68 = vpack.c.b16 %v56, %v55
  %v69 = vpack.c.b16 %v58, %v57
  %v70 = vpack.c.b16 %v60, %v59
  %v71 = vpack.c.b16 %v62, %v61
  %v72 = vpack.c.b16 %v64, %v63
  %v78 = vunpack.c.l.b16 %v28
  %v79 = vunpack.c.h.b16 %v28
  %v80 = vunpack.c.l.b16 %v29
  %v81 = vunpack.c.h.b16 %v29
  %v82 = vunpack.c.l.b16 %v30
  %v83 = vunpack.c.h.b16 %v30
  %v84 = vunpack.c.l.b16 %v31
  %v85 = vunpack.c.h.b16 %v31
  %v86 = vunpack.c.l.b16 %v32
  %v87 = vunpack.c.h.b16 %v32
  %v88 = vpack.c.b16 %v80, %v78
  %v89 = vpack.c.b16 %v81, %v79
  %v90 = vpack.c.b16 %v84, %v82
  %v91 = vpack.c.b16 %v85, %v83
  %v92 = vpack.c.b16 %v86, %v86
  %v93 = vpack.c.b16 %v87, %v87
  %vm98 = vcmask 293888
  %v100 = vsel %vm98, %v65, 0
  %v103 = vsel %vm98, %v66, 0
  %v106 = vsel %vm98, %v67, 0
  %v109 = vsel %vm98, %v68, 0
  %v112 = vsel %vm98, %v69, 0
  %v115 = vsel %vm98, %v70, 0
  %v118 = vsel %vm98, %v71, 0
  %v121 = vsel %vm98, %v72, 0
  %vm123 = vcmask 1041408
  %v125 = vsel %vm123, %v92, 0
  %v128 = vsel %vm123, %v93, 0
  %130 = vmatpush.bf16.msra.mxu0 0
  %131 = vmatpush.bf16.msra.mxu0 0
  %132 = vmatpush.bf16.msra.mxu0 0
  %133 = vmatpush.bf16.msra.mxu0 0
  %134 = vmatpush.bf16.msra.mxu0 0
  %135 = vmatpush.bf16.msra.mxu0 %v125
  %136 = vmatpush.bf16.msra.mxu0 %v90
  %137 = vmatpush.bf16.msra.mxu0 %v88
  %138 = vmatmul.bf16.gmra.mxu0 %v100
  %v139 = vpop.f32.mrf.mxu0
  %v140 = vadd.f32 0.0, %v139
  %v141 = vpop.f32.mrf.mxu0
  %v142 = vadd.f32 0.0, %v141
  %143 = vmatmul.bf16.gmra.mxu0 %v103
  %v144 = vpop.f32.mrf.mxu0
  %v145 = vadd.f32 0.0, %v144
  %v146 = vpop.f32.mrf.mxu0
  %v147 = vadd.f32 0.0, %v146
  %148 = vmatmul.bf16.gmra.mxu0 %v106
  %v149 = vpop.f32.mrf.mxu0
  %v150 = vadd.f32 0.0, %v149
  %v151 = vpop.f32.mrf.mxu0
  %v152 = vadd.f32 0.0, %v151
  %153 = vmatmul.bf16.gmra.mxu0 %v109
  %v154 = vpop.f32.mrf.mxu0
  %v155 = vadd.f32 0.0, %v154
  %v156 = vpop.f32.mrf.mxu0
  %v157 = vadd.f32 0.0, %v156
  %158 = vmatmul.bf16.gmra.mxu0 %v112
  %v159 = vpop.f32.mrf.mxu0
  %v160 = vadd.f32 0.0, %v159
  %v161 = vpop.f32.mrf.mxu0
  %v162 = vadd.f32 0.0, %v161
  %163 = vmatmul.bf16.gmra.mxu0 %v115
  %v164 = vpop.f32.mrf.mxu0
  %v165 = vadd.f32 0.0, %v164
  %v166 = vpop.f32.mrf.mxu0
  %v167 = vadd.f32 0.0, %v166
  %168 = vmatmul.bf16.gmra.mxu0 %v118
  %v169 = vpop.f32.mrf.mxu0
  %v170 = vadd.f32 0.0, %v169
  %v171 = vpop.f32.mrf.mxu0
  %v172 = vadd.f32 0.0, %v171
  %173 = vmatmul.bf16.gmra.mxu0 %v121
  %v174 = vpop.f32.mrf.mxu0
  %v175 = vadd.f32 0.0, %v174
  %v176 = vpop.f32.mrf.mxu0
  %v177 = vadd.f32 0.0, %v176
  %178 = vdwg.mxu0
  %179 = vmatpush.bf16.msra.mxu0 0
  %180 = vmatpush.bf16.msra.mxu0 0
  %181 = vmatpush.bf16.msra.mxu0 0
  %182 = vmatpush.bf16.msra.mxu0 0
  %183 = vmatpush.bf16.msra.mxu0 0
  %184 = vmatpush.bf16.msra.mxu0 %v128
  %185 = vmatpush.bf16.msra.mxu0 %v91
  %186 = vmatpush.bf16.msra.mxu0 %v89
  %187 = vmatmul.bf16.gmra.mxu0 %v100
  %v188 = vpop.f32.mrf.mxu0
  %v189 = vadd.f32 0.0, %v188
  %v190 = vpop.f32.mrf.mxu0
  %v191 = vadd.f32 0.0, %v190
  %192 = vmatmul.bf16.gmra.mxu0 %v103
  %v193 = vpop.f32.mrf.mxu0
  %v194 = vadd.f32 0.0, %v193
  %v195 = vpop.f32.mrf.mxu0
  %v196 = vadd.f32 0.0, %v195
  %197 = vmatmul.bf16.gmra.mxu0 %v106
  %v198 = vpop.f32.mrf.mxu0
  %v199 = vadd.f32 0.0, %v198
  %v200 = vpop.f32.mrf.mxu0
  %v201 = vadd.f32 0.0, %v200
  %202 = vmatmul.bf16.gmra.mxu0 %v109
  %v203 = vpop.f32.mrf.mxu0
  %v204 = vadd.f32 0.0, %v203
  %v205 = vpop.f32.mrf.mxu0
  %v206 = vadd.f32 0.0, %v205
  %207 = vmatmul.bf16.gmra.mxu0 %v112
  %v208 = vpop.f32.mrf.mxu0
  %v209 = vadd.f32 0.0, %v208
  %v210 = vpop.f32.mrf.mxu0
  %v211 = vadd.f32 0.0, %v210
  %212 = vmatmul.bf16.gmra.mxu0 %v115
  %v213 = vpop.f32.mrf.mxu0
  %v214 = vadd.f32 0.0, %v213
  %v215 = vpop.f32.mrf.mxu0
  %v216 = vadd.f32 0.0, %v215
  %217 = vmatmul.bf16.gmra.mxu0 %v118
  %v218 = vpop.f32.mrf.mxu0
  %v219 = vadd.f32 0.0, %v218
  %v220 = vpop.f32.mrf.mxu0
  %v221 = vadd.f32 0.0, %v220
  %222 = vmatmul.bf16.gmra.mxu0 %v121
  %v223 = vpop.f32.mrf.mxu0
  %v224 = vadd.f32 0.0, %v223
  %v225 = vpop.f32.mrf.mxu0
  %v226 = vadd.f32 0.0, %v225
  %227 = vdwg.mxu0
  %228 = vst [vmem:[%s2] sm:$0xff] %v140
  %229 = vst [vmem:[%s2 + $0x8] sm:$0xff] %v189
  %230 = vst [vmem:[%s2 + $0x10] sm:$0xff] %v142
  %231 = vst [vmem:[%s2 + $0x18] sm:$0xff] %v191
  %232 = vst [vmem:[%s2 + $0x20] sm:$0xff] %v145
  %233 = vst [vmem:[%s2 + $0x28] sm:$0xff] %v194
  %234 = vst [vmem:[%s2 + $0x30] sm:$0xff] %v147
  %235 = vst [vmem:[%s2 + $0x38] sm:$0xff] %v196
  %236 = vst [vmem:[%s2 + $0x40] sm:$0xff] %v150
  %237 = vst [vmem:[%s2 + $0x48] sm:$0xff] %v199
  %238 = vst [vmem:[%s2 + $0x50] sm:$0xff] %v152
  %239 = vst [vmem:[%s2 + $0x58] sm:$0xff] %v201
  %240 = vst [vmem:[%s2 + $0x60] sm:$0xff] %v155
  %241 = vst [vmem:[%s2 + $0x68] sm:$0xff] %v204
  %242 = vst [vmem:[%s2 + $0x70] sm:$0xff] %v157
  %243 = vst [vmem:[%s2 + $0x78] sm:$0xff] %v206
  %244 = vst [vmem:[%s2 + $0x80] sm:$0xff] %v160
  %245 = vst [vmem:[%s2 + $0x88] sm:$0xff] %v209
  %246 = vst [vmem:[%s2 + $0x90] sm:$0xff] %v162
  %247 = vst [vmem:[%s2 + $0x98] sm:$0xff] %v211
  %248 = vst [vmem:[%s2 + $0xa0] sm:$0xff] %v165
  %249 = vst [vmem:[%s2 + $0xa8] sm:$0xff] %v214
  %250 = vst [vmem:[%s2 + $0xb0] sm:$0xff] %v167
  %251 = vst [vmem:[%s2 + $0xb8] sm:$0xff] %v216
  %252 = vst [vmem:[%s2 + $0xc0] sm:$0xff] %v170
  %253 = vst [vmem:[%s2 + $0xc8] sm:$0xff] %v219
  %254 = vst [vmem:[%s2 + $0xd0] sm:$0xff] %v172
  %255 = vst [vmem:[%s2 + $0xd8] sm:$0xff] %v221
  %256 = vst [vmem:[%s2 + $0xe0] sm:$0xff] %v175
  %257 = vst [vmem:[%s2 + $0xe8] sm:$0xff] %v224
  %258 = vst [vmem:[%s2 + $0xf0] sm:$0xff] %v177
  %259 = vst [vmem:[%s2 + $0xf8] sm:$0xff] %v226
  %s260 = scalar_lea.vmem %s1, 40
  %v261 = vld [vmem:[%s260] sm:$0xff]
  %v262 = vld [vmem:[%s260 + $0x8] sm:$0xff]
  %v263 = vld [vmem:[%s260 + $0x10] sm:$0xff]
  %v264 = vld [vmem:[%s260 + $0x18] sm:$0xff]
  %v265 = vld [vmem:[%s260 + $0x20] sm:$0x33]
  %v271 = vunpack.c.l.b16 %v261
  %v272 = vunpack.c.h.b16 %v261
  %v273 = vunpack.c.l.b16 %v262
  %v274 = vunpack.c.h.b16 %v262
  %v275 = vunpack.c.l.b16 %v263
  %v276 = vunpack.c.h.b16 %v263
  %v277 = vunpack.c.l.b16 %v264
  %v278 = vunpack.c.h.b16 %v264
  %v279 = vunpack.c.l.b16 %v265
  %v280 = vunpack.c.h.b16 %v265
  %v281 = vpack.c.b16 %v273, %v271
  %v282 = vpack.c.b16 %v274, %v272
  %v283 = vpack.c.b16 %v277, %v275
  %v284 = vpack.c.b16 %v278, %v276
  %v285 = vpack.c.b16 %v279, %v279
  %v286 = vpack.c.b16 %v280, %v280
  %v292 = vsel %vm123, %v285, 0
  %v295 = vsel %vm123, %v286, 0
  %297 = vmatpush.bf16.msra.mxu0 0
  %298 = vmatpush.bf16.msra.mxu0 0
  %299 = vmatpush.bf16.msra.mxu0 0
  %300 = vmatpush.bf16.msra.mxu0 0
  %301 = vmatpush.bf16.msra.mxu0 0
  %302 = vmatpush.bf16.msra.mxu0 %v292
  %303 = vmatpush.bf16.msra.mxu0 %v283
  %304 = vmatpush.bf16.msra.mxu0 %v281
  %305 = vmatmul.bf16.gmra.mxu0 %v100
  %v306 = vpop.f32.mrf.mxu0
  %v307 = vadd.f32 0.0, %v306
  %v308 = vpop.f32.mrf.mxu0
  %v309 = vadd.f32 0.0, %v308
  %310 = vmatmul.bf16.gmra.mxu0 %v103
  %v311 = vpop.f32.mrf.mxu0
  %v312 = vadd.f32 0.0, %v311
  %v313 = vpop.f32.mrf.mxu0
  %v314 = vadd.f32 0.0, %v313
  %315 = vmatmul.bf16.gmra.mxu0 %v106
  %v316 = vpop.f32.mrf.mxu0
  %v317 = vadd.f32 0.0, %v316
  %v318 = vpop.f32.mrf.mxu0
  %v319 = vadd.f32 0.0, %v318
  %320 = vmatmul.bf16.gmra.mxu0 %v109
  %v321 = vpop.f32.mrf.mxu0
  %v322 = vadd.f32 0.0, %v321
  %v323 = vpop.f32.mrf.mxu0
  %v324 = vadd.f32 0.0, %v323
  %325 = vmatmul.bf16.gmra.mxu0 %v112
  %v326 = vpop.f32.mrf.mxu0
  %v327 = vadd.f32 0.0, %v326
  %v328 = vpop.f32.mrf.mxu0
  %v329 = vadd.f32 0.0, %v328
  %330 = vmatmul.bf16.gmra.mxu0 %v115
  %v331 = vpop.f32.mrf.mxu0
  %v332 = vadd.f32 0.0, %v331
  %v333 = vpop.f32.mrf.mxu0
  %v334 = vadd.f32 0.0, %v333
  %335 = vmatmul.bf16.gmra.mxu0 %v118
  %v336 = vpop.f32.mrf.mxu0
  %v337 = vadd.f32 0.0, %v336
  %v338 = vpop.f32.mrf.mxu0
  %v339 = vadd.f32 0.0, %v338
  %340 = vmatmul.bf16.gmra.mxu0 %v121
  %v341 = vpop.f32.mrf.mxu0
  %v342 = vadd.f32 0.0, %v341
  %v343 = vpop.f32.mrf.mxu0
  %v344 = vadd.f32 0.0, %v343
  %345 = vdwg.mxu0
  %346 = vmatpush.bf16.msra.mxu0 0
  %347 = vmatpush.bf16.msra.mxu0 0
  %348 = vmatpush.bf16.msra.mxu0 0
  %349 = vmatpush.bf16.msra.mxu0 0
  %350 = vmatpush.bf16.msra.mxu0 0
  %351 = vmatpush.bf16.msra.mxu0 %v295
  %352 = vmatpush.bf16.msra.mxu0 %v284
  %353 = vmatpush.bf16.msra.mxu0 %v282
  %354 = vmatmul.bf16.gmra.mxu0 %v100
  %v355 = vpop.f32.mrf.mxu0
  %v356 = vadd.f32 0.0, %v355
  %v357 = vpop.f32.mrf.mxu0
  %v358 = vadd.f32 0.0, %v357
  %359 = vmatmul.bf16.gmra.mxu0 %v103
  %v360 = vpop.f32.mrf.mxu0
  %v361 = vadd.f32 0.0, %v360
  %v362 = vpop.f32.mrf.mxu0
  %v363 = vadd.f32 0.0, %v362
  %364 = vmatmul.bf16.gmra.mxu0 %v106
  %v365 = vpop.f32.mrf.mxu0
  %v366 = vadd.f32 0.0, %v365
  %v367 = vpop.f32.mrf.mxu0
  %v368 = vadd.f32 0.0, %v367
  %369 = vmatmul.bf16.gmra.mxu0 %v109
  %v370 = vpop.f32.mrf.mxu0
  %v371 = vadd.f32 0.0, %v370
  %v372 = vpop.f32.mrf.mxu0
  %v373 = vadd.f32 0.0, %v372
  %374 = vmatmul.bf16.gmra.mxu0 %v112
  %v375 = vpop.f32.mrf.mxu0
  %v376 = vadd.f32 0.0, %v375
  %v377 = vpop.f32.mrf.mxu0
  %v378 = vadd.f32 0.0, %v377
  %379 = vmatmul.bf16.gmra.mxu0 %v115
  %v380 = vpop.f32.mrf.mxu0
  %v381 = vadd.f32 0.0, %v380
  %v382 = vpop.f32.mrf.mxu0
  %v383 = vadd.f32 0.0, %v382
  %384 = vmatmul.bf16.gmra.mxu0 %v118
  %v385 = vpop.f32.mrf.mxu0
  %v386 = vadd.f32 0.0, %v385
  %v387 = vpop.f32.mrf.mxu0
  %v388 = vadd.f32 0.0, %v387
  %389 = vmatmul.bf16.gmra.mxu0 %v121
  %v390 = vpop.f32.mrf.mxu0
  %v391 = vadd.f32 0.0, %v390
  %v392 = vpop.f32.mrf.mxu0
  %v393 = vadd.f32 0.0, %v392
  %394 = vdwg.mxu0
  %s395 = scalar_lea.vmem %s2, 256
  %396 = vst [vmem:[%s395] sm:$0xff] %v307
  %397 = vst [vmem:[%s395 + $0x8] sm:$0xff] %v356
  %398 = vst [vmem:[%s395 + $0x10] sm:$0xff] %v309
  %399 = vst [vmem:[%s395 + $0x18] sm:$0xff] %v358
  %400 = vst [vmem:[%s395 + $0x20] sm:$0xff] %v312
  %401 = vst [vmem:[%s395 + $0x28] sm:$0xff] %v361
  %402 = vst [vmem:[%s395 + $0x30] sm:$0xff] %v314
  %403 = vst [vmem:[%s395 + $0x38] sm:$0xff] %v363
  %404 = vst [vmem:[%s395 + $0x40] sm:$0xff] %v317
  %405 = vst [vmem:[%s395 + $0x48] sm:$0xff] %v366
  %406 = vst [vmem:[%s395 + $0x50] sm:$0xff] %v319
  %407 = vst [vmem:[%s395 + $0x58] sm:$0xff] %v368
  %408 = vst [vmem:[%s395 + $0x60] sm:$0xff] %v322
  %409 = vst [vmem:[%s395 + $0x68] sm:$0xff] %v371
  %410 = vst [vmem:[%s395 + $0x70] sm:$0xff] %v324
  %411 = vst [vmem:[%s395 + $0x78] sm:$0xff] %v373
  %412 = vst [vmem:[%s395 + $0x80] sm:$0xff] %v327
  %413 = vst [vmem:[%s395 + $0x88] sm:$0xff] %v376
  %414 = vst [vmem:[%s395 + $0x90] sm:$0xff] %v329
  %415 = vst [vmem:[%s395 + $0x98] sm:$0xff] %v378
  %416 = vst [vmem:[%s395 + $0xa0] sm:$0xff] %v332
  %417 = vst [vmem:[%s395 + $0xa8] sm:$0xff] %v381
  %418 = vst [vmem:[%s395 + $0xb0] sm:$0xff] %v334
  %419 = vst [vmem:[%s395 + $0xb8] sm:$0xff] %v383
  %420 = vst [vmem:[%s395 + $0xc0] sm:$0xff] %v337
  %421 = vst [vmem:[%s395 + $0xc8] sm:$0xff] %v386
  %422 = vst [vmem:[%s395 + $0xd0] sm:$0xff] %v339
  %423 = vst [vmem:[%s395 + $0xd8] sm:$0xff] %v388
  %424 = vst [vmem:[%s395 + $0xe0] sm:$0xff] %v342
  %425 = vst [vmem:[%s395 + $0xe8] sm:$0xff] %v391
  %426 = vst [vmem:[%s395 + $0xf0] sm:$0xff] %v344
  %427 = vst [vmem:[%s395 + $0xf8] sm:$0xff] %v393
  // Predicated region
  $region10: #{tmae_token_embedding_forward.1} parent=0 // pred_check
    _
  $region11: #{tmae_token_embedding_forward.1} parent=0 // pred_check_branch
    %429 = sbr.rel (0) target = $region13
  $region12: #{tmae_token_embedding_forward.1} parent=0 // pred_region
    _
  $region13: #{tmae_token_embedding_forward.1} parent=0 // pred_fallthru
    _
  // Predicated region
  $region14: #{tmae_token_embedding_forward.1} parent=0 // pred_check
    _
  $region15: #{tmae_token_embedding_forward.1} parent=0 // pred_check_branch
    %431 = sbr.rel (0) target = $region17
  $region16: #{tmae_token_embedding_forward.1} parent=0 // pred_region
    _
  $region17: #{tmae_token_embedding_forward.1} parent=0 // pred_fallthru
    _

</llo_original>
